<compile_context>
chip_gen: v7x
topology: tpu7x:2x2x1
jax: 0.10.0
libtpu: 0.0.40
codegen_flags: <defaults>
</compile_context>

<pallas_src>
import functools
import math

import jax
import jax.numpy as jnp
from jax import lax
from jax.experimental import pallas as pl
from jax.experimental.pallas import tpu as pltpu


# --------------------------------------------------------------------------
# Kernel A: pooled -> fc -> BN -> feat, feat_n
# --------------------------------------------------------------------------
def _feat_kernel(x_ref, wfc_ref, bfc_ref, gamma_ref, beta_ref,
                 feat_ref, featn_ref, *, bn_eps, inv_hw):
    # backbone.forward_features modeled as global average pool; x is (B, C, H*W)
    # so the reduction axis is lane-dense (no (8,8)->(8,128) padding blowup).
    x = x_ref[...]                                    # (B, C, HW) f32
    pooled = jnp.sum(x, axis=-1) * inv_hw             # (B, C)

    # self.fc : Linear(C -> fc_dim).  NT contraction (dim 1 of both operands),
    # consumed natively by the MXU -- no in-kernel transpose of the weight.
    h = lax.dot_general(pooled, wfc_ref[...],
                        (((1,), (1,)), ((), ())),
                        preferred_element_type=jnp.float32)   # (B, fc_dim)
    h = h + bfc_ref[...]                              # bias (1, fc_dim)

    # self.bn : BatchNorm1d, training mode (biased batch variance).
    mean = jnp.mean(h, axis=0, keepdims=True)
    d = h - mean
    var = jnp.mean(d * d, axis=0, keepdims=True)
    feat = d * lax.rsqrt(var + bn_eps)
    feat = feat * gamma_ref[...] + beta_ref[...]
    feat_ref[...] = feat

    # F.normalize(feat): feat / max(||feat||, 1e-12)  ==  feat * rsqrt(max(ss, 1e-24))
    ss = jnp.sum(feat * feat, axis=1, keepdims=True)
    featn_ref[...] = feat * lax.rsqrt(jnp.maximum(ss, 1e-24))


# --------------------------------------------------------------------------
# Kernel B: ArcMarginProduct, tiled over num_classes
# --------------------------------------------------------------------------
def _arc_kernel(featn_ref, warc_ref, winv_ref, label_ref, logits_ref,
                *, s, cos_m, sin_m, th, mm, tile_nc, matmul_dtype):
    j = pl.program_id(0)

    feat_n = featn_ref[...]                           # (B, fc_dim) f32
    w = warc_ref[...]                                 # (TILE_NC, fc_dim)

    # cosine = F.linear(F.normalize(feat), F.normalize(weight))
    #        = (feat_n . w^T) * (1/||w_row||), with the column scale applied
    # after the matmul so the weight is never duplicated in VMEM.
    cosine = lax.dot_general(feat_n.astype(matmul_dtype), w.astype(matmul_dtype),
                             (((1,), (1,)), ((), ())),
                             preferred_element_type=jnp.float32)  # (B, TILE_NC)
    cosine = cosine * winv_ref[...]                   # (1, TILE_NC) broadcast

    # ArcFace margin (easy_margin=False), all elementwise math in f32.
    sine = jnp.sqrt(jnp.maximum(1.0 - cosine * cosine, 0.0))
    phi = cosine * cos_m - sine * sin_m
    phi = jnp.where(cosine > th, phi, cosine - mm)

    labels = label_ref[...]                           # (B, 1) int32
    cls_ids = lax.broadcasted_iota(jnp.int32, cosine.shape, 1) + j * tile_nc
    # Fused one-hot blend: s * where(one_hot, phi, cosine)
    logits_ref[...] = s * jnp.where(cls_ids == labels, phi, cosine)


# --------------------------------------------------------------------------
# Wrapper
# --------------------------------------------------------------------------
def _pick_tile_nc(num_classes):
    for t in (2048, 1024, 512, 256, 128):             # <= 2048 f32 keeps v7x VMEM happy
        if num_classes % t == 0:
            return t
    return num_classes


def shopee_forward(x, label, params, *, s=30.0, m=0.5, tile_nc=None,
                   matmul_dtype=jnp.float32):
    """Returns (logits, feat) matching ShopeeNet.forward(x, label)."""
    w_fc, b_fc, gamma, beta, w_arc = (params["w_fc"], params["b_fc"],
                                      params["gamma"], params["beta"],
                                      params["w_arc"])
    B, C, H, W = x.shape
    fc_dim = w_fc.shape[0]
    num_classes = w_arc.shape[0]
    if tile_nc is None:
        tile_nc = _pick_tile_nc(num_classes)
    assert num_classes % tile_nc == 0

    vmem = pl.BlockSpec(memory_space=pltpu.MemorySpace.VMEM)

    # ---------------- Kernel A: features ----------------
    feat_kernel = functools.partial(_feat_kernel, bn_eps=1e-5, inv_hw=1.0 / (H * W))
    x_flat = x.reshape(B, C, H * W)                   # lane-dense reduction axis
    feat, feat_n = pl.pallas_call(
        feat_kernel,
        out_shape=(
            jax.ShapeDtypeStruct((B, fc_dim), jnp.float32),
            jax.ShapeDtypeStruct((B, fc_dim), jnp.float32),
        ),
        in_specs=[vmem] * 5,
        out_specs=(vmem, vmem),
    )(x_flat, w_fc, b_fc.reshape(1, fc_dim), gamma.reshape(1, fc_dim),
      beta.reshape(1, fc_dim))

    # ---------------- Kernel B: ArcMargin, class-tiled ----------------
    # Tiny (1, NC) per-class inverse weight norm, precomputed once per call so
    # the (NC, fc_dim) weight is never re-normalized/duplicated in VMEM.
    w_inv_norm = lax.rsqrt(
        jnp.maximum(jnp.sum(w_arc * w_arc, axis=1), 1e-24)).reshape(1, num_classes)
    label2d = label.astype(jnp.int32).reshape(B, 1)

    arc_kernel = functools.partial(
        _arc_kernel,
        s=float(s), cos_m=math.cos(m), sin_m=math.sin(m),
        th=math.cos(math.pi - m), mm=math.sin(math.pi - m) * m,
        tile_nc=tile_nc, matmul_dtype=matmul_dtype,
    )
    n_tiles = num_classes // tile_nc
    cost = pl.CostEstimate(
        flops=2 * B * fc_dim * num_classes + 8 * B * num_classes,
        transcendentals=B * num_classes,
        bytes_accessed=4 * (num_classes * fc_dim + n_tiles * B * fc_dim
                            + B * num_classes + num_classes + n_tiles * B),
    )

    logits = pl.pallas_call(
        arc_kernel,
        out_shape=jax.ShapeDtypeStruct((B, num_classes), jnp.float32),
        grid=(n_tiles,),
        in_specs=[
            pl.BlockSpec((B, fc_dim), lambda j: (0, 0)),       # feat_n (resident)
            pl.BlockSpec((tile_nc, fc_dim), lambda j: (j, 0)), # w_arc tile (streamed)
            pl.BlockSpec((1, tile_nc), lambda j: (0, j)),      # inv weight norms
            pl.BlockSpec((B, 1), lambda j: (0, 0)),            # labels
        ],
        out_specs=pl.BlockSpec((B, tile_nc), lambda j: (0, j)),
        compiler_params=pltpu.CompilerParams(
            dimension_semantics=("parallel",),                 # v7x: 2 TCs split tiles
            vmem_limit_bytes=48 * 1024 * 1024,
        ),
        cost_estimate=cost,
    )(feat_n, w_arc, w_inv_norm, label2d)

    return logits, feat


# --------------------------------------------------------------------------
# Pure-JAX reference (same math as the PyTorch module).
# --------------------------------------------------------------------------
def _reference_forward(x, label, params, *, s=30.0, m=0.5):
    pooled = jnp.mean(x, axis=(2, 3))
    h = pooled @ params["w_fc"].T + params["b_fc"]
    mean = jnp.mean(h, axis=0, keepdims=True)
    var = jnp.mean((h - mean) ** 2, axis=0, keepdims=True)
    feat = (h - mean) / jnp.sqrt(var + 1e-5) * params["gamma"] + params["beta"]
    feat_n = feat / jnp.maximum(jnp.linalg.norm(feat, axis=1, keepdims=True), 1e-12)
    w_n = params["w_arc"] / jnp.maximum(
        jnp.linalg.norm(params["w_arc"], axis=1, keepdims=True), 1e-12)
    cosine = feat_n @ w_n.T
    sine = jnp.sqrt(jnp.maximum(1.0 - cosine ** 2, 0.0))
    phi = cosine * math.cos(m) - sine * math.sin(m)
    phi = jnp.where(cosine > math.cos(math.pi - m), phi,
                    cosine - math.sin(math.pi - m) * m)
    one_hot = jax.nn.one_hot(label, cosine.shape[1], dtype=cosine.dtype)
    logits = s * (one_hot * phi + (1.0 - one_hot) * cosine)
    return logits, feat


def init_params(key, num_features, fc_dim, num_classes):
    k_fc, k_arc = jax.random.split(key)
    # nn.init.xavier_normal_(fc.weight)
    std = math.sqrt(2.0 / (num_features + fc_dim))
    w_fc = std * jax.random.normal(k_fc, (fc_dim, num_features), jnp.float32)
    b_fc = jnp.zeros((fc_dim,), jnp.float32)              # constant_(fc.bias, 0)
    gamma = jnp.ones((fc_dim,), jnp.float32)              # constant_(bn.weight, 1)
    beta = jnp.zeros((fc_dim,), jnp.float32)              # constant_(bn.bias, 0)
    # ArcMarginProduct weight: xavier_uniform_
    bound = math.sqrt(6.0 / (fc_dim + num_classes))
    w_arc = jax.random.uniform(k_arc, (num_classes, fc_dim), jnp.float32,
                               minval=-bound, maxval=bound)
    return dict(w_fc=w_fc, b_fc=b_fc, gamma=gamma, beta=beta, w_arc=w_arc)


if __name__ == "__main__":
    B, C, H, W = 8, 32, 8, 8          # num_features = C = 32 (DIVIDABLE_BY)
    FC_DIM, NUM_CLASSES = 128, 512    # 2 class tiles of 256 -> exercises the grid
    S, M = 30.0, 0.5

    key = jax.random.PRNGKey(0)
    k_x, k_lbl, k_p = jax.random.split(key, 3)
    x = jax.random.normal(k_x, (B, C, H, W), jnp.float32)
    label = jax.random.randint(k_lbl, (B,), 0, NUM_CLASSES, jnp.int32)
    params = init_params(k_p, C, FC_DIM, NUM_CLASSES)

    logits, feat = shopee_forward(x, label, params, s=S, m=M)
    jax.block_until_ready((logits, feat))

    ref_logits, ref_feat = _reference_forward(x, label, params, s=S, m=M)
    assert logits.shape == (B, NUM_CLASSES) and feat.shape == (B, FC_DIM)
    assert jnp.allclose(logits, ref_logits, atol=1e-4, rtol=1e-4)
    assert jnp.allclose(feat, ref_feat, atol=1e-4, rtol=1e-4)
    print("KERNEL_OK")
</pallas_src>

<mosaic_0001>
module attributes {stable_mosaic.version = 11 : i64} {
  func.func @_feat_kernel(%arg0: memref<8x32x64xf32, #tpu.memory_space<vmem>>, %arg1: memref<128x32xf32, #tpu.memory_space<vmem>>, %arg2: memref<1x128xf32, #tpu.memory_space<vmem>>, %arg3: memref<1x128xf32, #tpu.memory_space<vmem>>, %arg4: memref<1x128xf32, #tpu.memory_space<vmem>>, %arg5: memref<8x128xf32, #tpu.memory_space<vmem>>, %arg6: memref<8x128xf32, #tpu.memory_space<vmem>>) attributes {dimension_semantics = [], scalar_prefetch = 0 : i64, scratch_operands = 0 : i64, tpu.core_type = #tpu.core_type<tc>} {
    %c0 = arith.constant 0 : index
    %c0_0 = arith.constant 0 : index
    %c0_1 = arith.constant 0 : index
    %0 = vector.load %arg0[%c0, %c0_0, %c0_1] : memref<8x32x64xf32, #tpu.memory_space<vmem>>, vector<8x32x64xf32>
    %cst = arith.constant dense<0.000000e+00> : vector<8x32xf32>
    %1 = vector.multi_reduction <add>, %0, %cst [2] : vector<8x32x64xf32> to vector<8x32xf32>
    %cst_2 = arith.constant 1.562500e-02 : f32
    %2 = vector.broadcast %cst_2 : f32 to vector<8x32xf32>
    %3 = arith.mulf %1, %2 : vector<8x32xf32>
    %c0_3 = arith.constant 0 : index
    %c0_4 = arith.constant 0 : index
    %4 = vector.load %arg1[%c0_3, %c0_4] : memref<128x32xf32, #tpu.memory_space<vmem>>, vector<128x32xf32>
    %cst_5 = arith.constant dense<0.000000e+00> : vector<8x128xf32>
    %5 = tpu.matmul %3, %4, %cst_5 {dimension_numbers = #tpu.dot_dimension_numbers<[1], [1], [0], [0], [0, 0, 1, 0], [], []>} : vector<8x32xf32>, vector<128x32xf32>, vector<8x128xf32> -> vector<8x128xf32>
    %c0_6 = arith.constant 0 : index
    %c0_7 = arith.constant 0 : index
    %6 = vector.load %arg2[%c0_6, %c0_7] : memref<1x128xf32, #tpu.memory_space<vmem>>, vector<1x128xf32>
    %7 = vector.broadcast %6 : vector<1x128xf32> to vector<8x128xf32>
    %8 = arith.addf %5, %7 : vector<8x128xf32>
    %cst_8 = arith.constant dense<0.000000e+00> : vector<128xf32>
    %9 = vector.multi_reduction <add>, %8, %cst_8 [0] : vector<8x128xf32> to vector<128xf32>
    %10 = vector.shape_cast %9 : vector<128xf32> to vector<1x128xf32>
    %cst_9 = arith.constant 8.000000e+00 : f32
    %11 = vector.broadcast %cst_9 : f32 to vector<1x128xf32>
    %12 = arith.divf %10, %11 : vector<1x128xf32>
    %13 = vector.broadcast %12 : vector<1x128xf32> to vector<8x128xf32>
    %14 = arith.subf %8, %13 : vector<8x128xf32>
    %15 = arith.mulf %14, %14 : vector<8x128xf32>
    %cst_10 = arith.constant dense<0.000000e+00> : vector<128xf32>
    %16 = vector.multi_reduction <add>, %15, %cst_10 [0] : vector<8x128xf32> to vector<128xf32>
    %17 = vector.shape_cast %16 : vector<128xf32> to vector<1x128xf32>
    %cst_11 = arith.constant 8.000000e+00 : f32
    %18 = vector.broadcast %cst_11 : f32 to vector<1x128xf32>
    %19 = arith.divf %17, %18 : vector<1x128xf32>
    %cst_12 = arith.constant 9.99999974E-6 : f32
    %20 = vector.broadcast %cst_12 : f32 to vector<1x128xf32>
    %21 = arith.addf %19, %20 : vector<1x128xf32>
    %22 = math.rsqrt %21 : vector<1x128xf32>
    %23 = vector.broadcast %22 : vector<1x128xf32> to vector<8x128xf32>
    %24 = arith.mulf %14, %23 : vector<8x128xf32>
    %c0_13 = arith.constant 0 : index
    %c0_14 = arith.constant 0 : index
    %25 = vector.load %arg3[%c0_13, %c0_14] : memref<1x128xf32, #tpu.memory_space<vmem>>, vector<1x128xf32>
    %26 = vector.broadcast %25 : vector<1x128xf32> to vector<8x128xf32>
    %27 = arith.mulf %24, %26 : vector<8x128xf32>
    %c0_15 = arith.constant 0 : index
    %c0_16 = arith.constant 0 : index
    %28 = vector.load %arg4[%c0_15, %c0_16] : memref<1x128xf32, #tpu.memory_space<vmem>>, vector<1x128xf32>
    %29 = vector.broadcast %28 : vector<1x128xf32> to vector<8x128xf32>
    %30 = arith.addf %27, %29 : vector<8x128xf32>
    %c0_17 = arith.constant 0 : index
    %c0_18 = arith.constant 0 : index
    %31 = vector.load %arg5[%c0_17, %c0_18] : memref<8x128xf32, #tpu.memory_space<vmem>>, vector<8x128xf32>
    tpu.vector_store %arg5[%c0_17, %c0_18], %30 {strides = array<i32>} : memref<8x128xf32, #tpu.memory_space<vmem>>, vector<8x128xf32>,
    %32 = arith.mulf %30, %30 : vector<8x128xf32>
    %cst_19 = arith.constant dense<0.000000e+00> : vector<8xf32>
    %33 = vector.multi_reduction <add>, %32, %cst_19 [1] : vector<8x128xf32> to vector<8xf32>
    %34 = vector.shape_cast %33 : vector<8xf32> to vector<8x1xf32>
    %cst_20 = arith.constant 1.000000e-24 : f32
    %35 = vector.broadcast %cst_20 : f32 to vector<8x1xf32>
    %36 = arith.maximumf %34, %35 : vector<8x1xf32>
    %37 = math.rsqrt %36 : vector<8x1xf32>
    %38 = vector.broadcast %37 : vector<8x1xf32> to vector<8x128xf32>
    %39 = arith.mulf %30, %38 : vector<8x128xf32>
    %c0_21 = arith.constant 0 : index
    %c0_22 = arith.constant 0 : index
    %40 = vector.load %arg6[%c0_21, %c0_22] : memref<8x128xf32, #tpu.memory_space<vmem>>, vector<8x128xf32>
    tpu.vector_store %arg6[%c0_21, %c0_22], %39 {strides = array<i32>} : memref<8x128xf32, #tpu.memory_space<vmem>>, vector<8x128xf32>,
    return
  }
}

</mosaic_0001>

<llo_original>
// kernel: tpu_custom_call.1
$region0: #{tpu_custom_call.1}
  #allocation0 [shape = 'u32[]', space=smem, size = 0x4, offset = 0x4, fixed_abs, tag = 'smem constant byte address 0x4 - core index']
  #allocation1 [shape = 'u32[144,128]{1,0:T(1,128)}', space=vmem, size = 0x12000, scoped, tag = 'internal scratch']
  %s0 = inlined_call_operand.hbm [shape: f32[8,32,64], index: 0, kind: input, shape index: {}]
  %s1 = inlined_call_operand.vmem [shape: f32[128,32], index: 1, kind: input, shape index: {}]
  %s2 = inlined_call_operand.vmem [shape: f32[1,128], index: 2, kind: input, shape index: {}]
  %s3 = inlined_call_operand.vmem [shape: f32[1,128], index: 3, kind: input, shape index: {}]
  %s4 = inlined_call_operand.vmem [shape: f32[1,128], index: 4, kind: input, shape index: {}]
  %s5 = inlined_call_operand.hbm [shape: f32[8,128], index: 5, kind: output, shape index: {0}]
  %s6 = inlined_call_operand.hbm [shape: f32[8,128], index: 6, kind: output, shape index: {1}]
  %7 = xla_tuple %s5, %s6
  %s8 = sld [smem:[#allocation0]]
  $region42: #{tpu_custom_call.1} parent=0
    _
  %s10 = ssub.s32 1, %s8
  %s11 = scalar_select 0, %s10, %s8
  $region1: #{tpu_custom_call.1} parent=0
    #allocation2 [shape = 'u8[131072]{0}', space=vmem, size = 0x20000, scoped, tag = 'input window, operand 0, single buffered']
    #allocation3 [shape = 's32[1]{0}', space=sflag, size = 0x4, scoped, tag = 'scoped memory for tpu_custom_call.1']
    #allocation4 [shape = 's32[1]{0}', space=sflag, size = 0x4, scoped, tag = 'scoped memory for tpu_custom_call.1']
    #allocation5 [shape = 'u8[4096]{0}', space=vmem, size = 0x1000, scoped, tag = 'output window, operand 0, single buffered']
    #allocation6 [shape = 'u8[4096]{0}', space=vmem, size = 0x1000, scoped, tag = 'output window, operand 1, single buffered']
    #allocation7 [shape = 's32[1]{0}', space=sflag, size = 0x4, scoped, tag = 'scoped memory for tpu_custom_call.1']
    %12 = vsyncpa [#allocation3], 0
    %13 = vsyncpa [#allocation4], 0
    %14 = vsyncpa [#allocation7], 0
    // Predicated region
    $region2: #{tpu_custom_call.1} parent=1 // pred_check
      _
    $region3: #{tpu_custom_call.1} parent=1 // pred_check_branch
      %16 = sbr.rel (0) target = $region5
    $region4: #{tpu_custom_call.1} parent=1 // pred_region
      %s18 = ssub.s32 4096, 4096
      %19 = vsyncadd [#allocation3], %s18
      %s20 = sshll.u32 [#allocation2], 4
      %s21 = int_to_ptr.vmem [resolvable:$true] %s20
      %26 = dma.hbm_to_vmem [thread:$0]  %s0, 4096, %s21, [#allocation3], 128, 128, 8
    $region5: #{tpu_custom_call.1} parent=1 // pred_fallthru
      _
    // Predicated region
    $region6: #{tpu_custom_call.1} parent=1 // pred_check
      _
    $region7: #{tpu_custom_call.1} parent=1 // pred_check_branch
      %28 = sbr.rel (0) target = $region9
    $region8: #{tpu_custom_call.1} parent=1 // pred_region
      _
    $region9: #{tpu_custom_call.1} parent=1 // pred_fallthru
      _
    // Predicated region
    $region10: #{tpu_custom_call.1} parent=1 // pred_check
      _
    $region11: #{tpu_custom_call.1} parent=1 // pred_check_branch
      %30 = sbr.rel (0) target = $region13
    $region12: #{tpu_custom_call.1} parent=1 // pred_region
      _
    $region13: #{tpu_custom_call.1} parent=1 // pred_fallthru
      _
    // Predicated region
    $region14: #{tpu_custom_call.1} parent=1 // pred_check
      _
    $region15: #{tpu_custom_call.1} parent=1 // pred_check_branch
      %32 = sbr.rel (0) target = $region17
    $region16: #{tpu_custom_call.1} parent=1 // pred_region
      _
    $region17: #{tpu_custom_call.1} parent=1 // pred_fallthru
      _
    // Predicated region
    $region18: #{tpu_custom_call.1} parent=1 // pred_check
      _
    $region19: #{tpu_custom_call.1} parent=1 // pred_check_branch
      %34 = sbr.rel (0) target = $region21
    $region20: #{tpu_custom_call.1} parent=1 // pred_region
      _
    $region21: #{tpu_custom_call.1} parent=1 // pred_fallthru
      _
    // Predicated region
    $region22: #{tpu_custom_call.1} parent=1 // pred_check
      _
    $region23: #{tpu_custom_call.1} parent=1 // pred_check_branch
      %36 = sbr.rel (0) target = $region25
    $region24: #{tpu_custom_call.1} parent=1 // pred_region
      %37 = dma.done [#allocation3], 4096
    $region25: #{tpu_custom_call.1} parent=1 // pred_fallthru
      _
    %v38 = vld [vmem:[#allocation2] sm:$0xff]
    %v39 = vld [vmem:[#allocation2 + $0x8] sm:$0xff]
    %v40 = vld [vmem:[#allocation2 + $0x10] sm:$0xff]
    %v41 = vld [vmem:[#allocation2 + $0x18] sm:$0xff]
    %v42 = vld [vmem:[#allocation2 + $0x20] sm:$0xff]
    %v43 = vld [vmem:[#allocation2 + $0x28] sm:$0xff]
    %v44 = vld [vmem:[#allocation2 + $0x30] sm:$0xff]
    %v45 = vld [vmem:[#allocation2 + $0x38] sm:$0xff]
    %v46 = vld [vmem:[#allocation2 + $0x40] sm:$0xff]
    %v47 = vld [vmem:[#allocation2 + $0x48] sm:$0xff]
    %v48 = vld [vmem:[#allocation2 + $0x50] sm:$0xff]
    %v49 = vld [vmem:[#allocation2 + $0x58] sm:$0xff]
    %v50 = vld [vmem:[#allocation2 + $0x60] sm:$0xff]
    %v51 = vld [vmem:[#allocation2 + $0x68] sm:$0xff]
    %v52 = vld [vmem:[#allocation2 + $0x70] sm:$0xff]
    %v53 = vld [vmem:[#allocation2 + $0x78] sm:$0xff]
    %v54 = vld [vmem:[#allocation2 + $0x80] sm:$0xff]
    %v55 = vld [vmem:[#allocation2 + $0x88] sm:$0xff]
    %v56 = vld [vmem:[#allocation2 + $0x90] sm:$0xff]
    %v57 = vld [vmem:[#allocation2 + $0x98] sm:$0xff]
    %v58 = vld [vmem:[#allocation2 + $0xa0] sm:$0xff]
    %v59 = vld [vmem:[#allocation2 + $0xa8] sm:$0xff]
    %v60 = vld [vmem:[#allocation2 + $0xb0] sm:$0xff]
    %v61 = vld [vmem:[#allocation2 + $0xb8] sm:$0xff]
    %v62 = vld [vmem:[#allocation2 + $0xc0] sm:$0xff]
    %v63 = vld [vmem:[#allocation2 + $0xc8] sm:$0xff]
    %v64 = vld [vmem:[#allocation2 + $0xd0] sm:$0xff]
    %v65 = vld [vmem:[#allocation2 + $0xd8] sm:$0xff]
    %v66 = vld [vmem:[#allocation2 + $0xe0] sm:$0xff]
    %v67 = vld [vmem:[#allocation2 + $0xe8] sm:$0xff]
    %v68 = vld [vmem:[#allocation2 + $0xf0] sm:$0xff]
    %v69 = vld [vmem:[#allocation2 + $0xf8] sm:$0xff]
    %vm70 = vcmask 523264
    %v71 = vsel %vm70, %v38, 0.0
    %72 = vadd.xlane.f32.xlu0 %v71
    %v73 = vpop.xlane.xlu0 %72
    %v74 = vsel %vm70, %v39, 0.0
    %75 = vadd.xlane.f32.xlu0 %v74
    %v76 = vpop.xlane.xlu0 %75
    %v77 = vsel %vm70, %v40, 0.0
    %78 = vadd.xlane.f32.xlu0 %v77
    %v79 = vpop.xlane.xlu0 %78
    %v80 = vsel %vm70, %v41, 0.0
    %81 = vadd.xlane.f32.xlu0 %v80
    %v82 = vpop.xlane.xlu0 %81
    %v83 = vsel %vm70, %v42, 0.0
    %84 = vadd.xlane.f32.xlu0 %v83
    %v85 = vpop.xlane.xlu0 %84
    %v86 = vsel %vm70, %v43, 0.0
    %87 = vadd.xlane.f32.xlu0 %v86
    %v88 = vpop.xlane.xlu0 %87
    %v89 = vsel %vm70, %v44, 0.0
    %90 = vadd.xlane.f32.xlu0 %v89
    %v91 = vpop.xlane.xlu0 %90
    %v92 = vsel %vm70, %v45, 0.0
    %93 = vadd.xlane.f32.xlu0 %v92
    %v94 = vpop.xlane.xlu0 %93
    %v95 = vsel %vm70, %v46, 0.0
    %96 = vadd.xlane.f32.xlu0 %v95
    %v97 = vpop.xlane.xlu0 %96
    %v98 = vsel %vm70, %v47, 0.0
    %99 = vadd.xlane.f32.xlu0 %v98
    %v100 = vpop.xlane.xlu0 %99
    %v101 = vsel %vm70, %v48, 0.0
    %102 = vadd.xlane.f32.xlu0 %v101
    %v103 = vpop.xlane.xlu0 %102
    %v104 = vsel %vm70, %v49, 0.0
    %105 = vadd.xlane.f32.xlu0 %v104
    %v106 = vpop.xlane.xlu0 %105
    %v107 = vsel %vm70, %v50, 0.0
    %108 = vadd.xlane.f32.xlu0 %v107
    %v109 = vpop.xlane.xlu0 %108
    %v110 = vsel %vm70, %v51, 0.0
    %111 = vadd.xlane.f32.xlu0 %v110
    %v112 = vpop.xlane.xlu0 %111
    %v113 = vsel %vm70, %v52, 0.0
    %114 = vadd.xlane.f32.xlu0 %v113
    %v115 = vpop.xlane.xlu0 %114
    %v116 = vsel %vm70, %v53, 0.0
    %117 = vadd.xlane.f32.xlu0 %v116
    %v118 = vpop.xlane.xlu0 %117
    %v119 = vsel %vm70, %v54, 0.0
    %120 = vadd.xlane.f32.xlu0 %v119
    %v121 = vpop.xlane.xlu0 %120
    %v122 = vsel %vm70, %v55, 0.0
    %123 = vadd.xlane.f32.xlu0 %v122
    %v124 = vpop.xlane.xlu0 %123
    %v125 = vsel %vm70, %v56, 0.0
    %126 = vadd.xlane.f32.xlu0 %v125
    %v127 = vpop.xlane.xlu0 %126
    %v128 = vsel %vm70, %v57, 0.0
    %129 = vadd.xlane.f32.xlu0 %v128
    %v130 = vpop.xlane.xlu0 %129
    %v131 = vsel %vm70, %v58, 0.0
    %132 = vadd.xlane.f32.xlu0 %v131
    %v133 = vpop.xlane.xlu0 %132
    %v134 = vsel %vm70, %v59, 0.0
    %135 = vadd.xlane.f32.xlu0 %v134
    %v136 = vpop.xlane.xlu0 %135
    %v137 = vsel %vm70, %v60, 0.0
    %138 = vadd.xlane.f32.xlu0 %v137
    %v139 = vpop.xlane.xlu0 %138
    %v140 = vsel %vm70, %v61, 0.0
    %141 = vadd.xlane.f32.xlu0 %v140
    %v142 = vpop.xlane.xlu0 %141
    %v143 = vsel %vm70, %v62, 0.0
    %144 = vadd.xlane.f32.xlu0 %v143
    %v145 = vpop.xlane.xlu0 %144
    %v146 = vsel %vm70, %v63, 0.0
    %147 = vadd.xlane.f32.xlu0 %v146
    %v148 = vpop.xlane.xlu0 %147
    %v149 = vsel %vm70, %v64, 0.0
    %150 = vadd.xlane.f32.xlu0 %v149
    %v151 = vpop.xlane.xlu0 %150
    %v152 = vsel %vm70, %v65, 0.0
    %153 = vadd.xlane.f32.xlu0 %v152
    %v154 = vpop.xlane.xlu0 %153
    %v155 = vsel %vm70, %v66, 0.0
    %156 = vadd.xlane.f32.xlu0 %v155
    %v157 = vpop.xlane.xlu0 %156
    %v158 = vsel %vm70, %v67, 0.0
    %159 = vadd.xlane.f32.xlu0 %v158
    %v160 = vpop.xlane.xlu0 %159
    %v161 = vsel %vm70, %v68, 0.0
    %162 = vadd.xlane.f32.xlu0 %v161
    %v163 = vpop.xlane.xlu0 %162
    %v164 = vsel %vm70, %v69, 0.0
    %165 = vadd.xlane.f32.xlu0 %v164
    %v166 = vpop.xlane.xlu0 %165
    %v167 = vmul.f32 %v73, 0.015625
    %v168 = vmul.f32 %v76, 0.015625
    %v169 = vmul.f32 %v79, 0.015625
    %v170 = vmul.f32 %v82, 0.015625
    %v171 = vmul.f32 %v85, 0.015625
    %v172 = vmul.f32 %v88, 0.015625
    %v173 = vmul.f32 %v91, 0.015625
    %v174 = vmul.f32 %v94, 0.015625
    %v175 = vmul.f32 %v97, 0.015625
    %v176 = vmul.f32 %v100, 0.015625
    %v177 = vmul.f32 %v103, 0.015625
    %v178 = vmul.f32 %v106, 0.015625
    %v179 = vmul.f32 %v109, 0.015625
    %v180 = vmul.f32 %v112, 0.015625
    %v181 = vmul.f32 %v115, 0.015625
    %v182 = vmul.f32 %v118, 0.015625
    %v183 = vmul.f32 %v121, 0.015625
    %v184 = vmul.f32 %v124, 0.015625
    %v185 = vmul.f32 %v127, 0.015625
    %v186 = vmul.f32 %v130, 0.015625
    %v187 = vmul.f32 %v133, 0.015625
    %v188 = vmul.f32 %v136, 0.015625
    %v189 = vmul.f32 %v139, 0.015625
    %v190 = vmul.f32 %v142, 0.015625
    %v191 = vmul.f32 %v145, 0.015625
    %v192 = vmul.f32 %v148, 0.015625
    %v193 = vmul.f32 %v151, 0.015625
    %v194 = vmul.f32 %v154, 0.015625
    %v195 = vmul.f32 %v157, 0.015625
    %v196 = vmul.f32 %v160, 0.015625
    %v197 = vmul.f32 %v163, 0.015625
    %v198 = vmul.f32 %v166, 0.015625
    %v199 = vld [vmem:[%s1] sm:$0xff]
    %v200 = vld [vmem:[%s1 + $0x8] sm:$0xff]
    %v201 = vld [vmem:[%s1 + $0x10] sm:$0xff]
    %v202 = vld [vmem:[%s1 + $0x18] sm:$0xff]
    %v203 = vld [vmem:[%s1 + $0x20] sm:$0xff]
    %v204 = vld [vmem:[%s1 + $0x28] sm:$0xff]
    %v205 = vld [vmem:[%s1 + $0x30] sm:$0xff]
    %v206 = vld [vmem:[%s1 + $0x38] sm:$0xff]
    %v207 = vld [vmem:[%s1 + $0x40] sm:$0xff]
    %v208 = vld [vmem:[%s1 + $0x48] sm:$0xff]
    %v209 = vld [vmem:[%s1 + $0x50] sm:$0xff]
    %v210 = vld [vmem:[%s1 + $0x58] sm:$0xff]
    %v211 = vld [vmem:[%s1 + $0x60] sm:$0xff]
    %v212 = vld [vmem:[%s1 + $0x68] sm:$0xff]
    %v213 = vld [vmem:[%s1 + $0x70] sm:$0xff]
    %v214 = vld [vmem:[%s1 + $0x78] sm:$0xff]
    %v215 = vld [vmem:[%s2] sm:$0x1]
    %v217 = vlaneseq
    %v218 = vshrl.u32 %v217, 7
    %v219 = vsub.s32 0, %v218
    %v220 = vrot.slane %v215, %v219
    %v254 = vlaneseq
    %v255 = vand.u32 %v254, 127
    %v256 = vlaneseq
    %v257 = vshrl.u32 %v256, 7
    %v258 = vsub.s32 %v255, %v257
    %v259 = vrot.slane %v167, %v258
    %v260 = vadd.s32 %v255, 4294967288
    %v261 = vlaneseq
    %v262 = vshrl.u32 %v261, 7
    %v263 = vsub.s32 %v260, %v262
    %v264 = vrot.slane %v168, %v263
    %vm265 = vcmask 130112
    %v266 = vsel %vm265, %v264, %v259
    %v267 = vadd.s32 %v255, 4294967280
    %v268 = vlaneseq
    %v269 = vshrl.u32 %v268, 7
    %v270 = vsub.s32 %v267, %v269
    %v271 = vrot.slane %v169, %v270
    %vm272 = vcmask 195712
    %v273 = vsel %vm272, %v271, %v266
    %v274 = vadd.s32 %v255, 4294967272
    %v275 = vlaneseq
    %v276 = vshrl.u32 %v275, 7
    %v277 = vsub.s32 %v274, %v276
    %v278 = vrot.slane %v170, %v277
    %vm279 = vcmask 261312
    %v280 = vsel %vm279, %v278, %v273
    %v281 = vlaneseq
    %v282 = vshrl.u32 %v281, 7
    %v283 = vsub.s32 %v255, %v282
    %v284 = vrot.slane %v171, %v283
    %v285 = vlaneseq
    %v286 = vshrl.u32 %v285, 7
    %v287 = vsub.s32 %v260, %v286
    %v288 = vrot.slane %v172, %v287
    %v289 = vsel %vm265, %v288, %v284
    %v290 = vlaneseq
    %v291 = vshrl.u32 %v290, 7
    %v292 = vsub.s32 %v267, %v291
    %v293 = vrot.slane %v173, %v292
    %v294 = vsel %vm272, %v293, %v289
    %v295 = vlaneseq
    %v296 = vshrl.u32 %v295, 7
    %v297 = vsub.s32 %v274, %v296
    %v298 = vrot.slane %v174, %v297
    %v299 = vsel %vm279, %v298, %v294
    %v300 = vlaneseq
    %v301 = vshrl.u32 %v300, 7
    %v302 = vsub.s32 %v255, %v301
    %v303 = vrot.slane %v175, %v302
    %v304 = vlaneseq
    %v305 = vshrl.u32 %v304, 7
    %v306 = vsub.s32 %v260, %v305
    %v307 = vrot.slane %v176, %v306
    %v308 = vsel %vm265, %v307, %v303
    %v309 = vlaneseq
    %v310 = vshrl.u32 %v309, 7
    %v311 = vsub.s32 %v267, %v310
    %v312 = vrot.slane %v177, %v311
    %v313 = vsel %vm272, %v312, %v308
    %v314 = vlaneseq
    %v315 = vshrl.u32 %v314, 7
    %v316 = vsub.s32 %v274, %v315
    %v317 = vrot.slane %v178, %v316
    %v318 = vsel %vm279, %v317, %v313
    %v319 = vlaneseq
    %v320 = vshrl.u32 %v319, 7
    %v321 = vsub.s32 %v255, %v320
    %v322 = vrot.slane %v179, %v321
    %v323 = vlaneseq
    %v324 = vshrl.u32 %v323, 7
    %v325 = vsub.s32 %v260, %v324
    %v326 = vrot.slane %v180, %v325
    %v327 = vsel %vm265, %v326, %v322
    %v328 = vlaneseq
    %v329 = vshrl.u32 %v328, 7
    %v330 = vsub.s32 %v267, %v329
    %v331 = vrot.slane %v181, %v330
    %v332 = vsel %vm272, %v331, %v327
    %v333 = vlaneseq
    %v334 = vshrl.u32 %v333, 7
    %v335 = vsub.s32 %v274, %v334
    %v336 = vrot.slane %v182, %v335
    %v337 = vsel %vm279, %v336, %v332
    %v338 = vlaneseq
    %v339 = vshrl.u32 %v338, 7
    %v340 = vsub.s32 %v255, %v339
    %v341 = vrot.slane %v183, %v340
    %v342 = vlaneseq
    %v343 = vshrl.u32 %v342, 7
    %v344 = vsub.s32 %v260, %v343
    %v345 = vrot.slane %v184, %v344
    %v346 = vsel %vm265, %v345, %v341
    %v347 = vlaneseq
    %v348 = vshrl.u32 %v347, 7
    %v349 = vsub.s32 %v267, %v348
    %v350 = vrot.slane %v185, %v349
    %v351 = vsel %vm272, %v350, %v346
    %v352 = vlaneseq
    %v353 = vshrl.u32 %v352, 7
    %v354 = vsub.s32 %v274, %v353
    %v355 = vrot.slane %v186, %v354
    %v356 = vsel %vm279, %v355, %v351
    %v357 = vlaneseq
    %v358 = vshrl.u32 %v357, 7
    %v359 = vsub.s32 %v255, %v358
    %v360 = vrot.slane %v187, %v359
    %v361 = vlaneseq
    %v362 = vshrl.u32 %v361, 7
    %v363 = vsub.s32 %v260, %v362
    %v364 = vrot.slane %v188, %v363
    %v365 = vsel %vm265, %v364, %v360
    %v366 = vlaneseq
    %v367 = vshrl.u32 %v366, 7
    %v368 = vsub.s32 %v267, %v367
    %v369 = vrot.slane %v189, %v368
    %v370 = vsel %vm272, %v369, %v365
    %v371 = vlaneseq
    %v372 = vshrl.u32 %v371, 7
    %v373 = vsub.s32 %v274, %v372
    %v374 = vrot.slane %v190, %v373
    %v375 = vsel %vm279, %v374, %v370
    %v376 = vlaneseq
    %v377 = vshrl.u32 %v376, 7
    %v378 = vsub.s32 %v255, %v377
    %v379 = vrot.slane %v191, %v378
    %v380 = vlaneseq
    %v381 = vshrl.u32 %v380, 7
    %v382 = vsub.s32 %v260, %v381
    %v383 = vrot.slane %v192, %v382
    %v384 = vsel %vm265, %v383, %v379
    %v385 = vlaneseq
    %v386 = vshrl.u32 %v385, 7
    %v387 = vsub.s32 %v267, %v386
    %v388 = vrot.slane %v193, %v387
    %v389 = vsel %vm272, %v388, %v384
    %v390 = vlaneseq
    %v391 = vshrl.u32 %v390, 7
    %v392 = vsub.s32 %v274, %v391
    %v393 = vrot.slane %v194, %v392
    %v394 = vsel %vm279, %v393, %v389
    %v395 = vlaneseq
    %v396 = vshrl.u32 %v395, 7
    %v397 = vsub.s32 %v255, %v396
    %v398 = vrot.slane %v195, %v397
    %v399 = vlaneseq
    %v400 = vshrl.u32 %v399, 7
    %v401 = vsub.s32 %v260, %v400
    %v402 = vrot.slane %v196, %v401
    %v403 = vsel %vm265, %v402, %v398
    %v404 = vlaneseq
    %v405 = vshrl.u32 %v404, 7
    %v406 = vsub.s32 %v267, %v405
    %v407 = vrot.slane %v197, %v406
    %v408 = vsel %vm272, %v407, %v403
    %v409 = vlaneseq
    %v410 = vshrl.u32 %v409, 7
    %v411 = vsub.s32 %v274, %v410
    %v412 = vrot.slane %v198, %v411
    %v413 = vsel %vm279, %v412, %v408
    %vm414 = vcmask 1041409
    %v415 = vsel %vm414, %v299, %v280
    %vm416 = vcmask 1042434
    %v417 = vsel %vm416, %v318, %v415
    %vm418 = vcmask 1043459
    %v419 = vsel %vm418, %v337, %v417
    %vm420 = vcmask 1044484
    %v421 = vsel %vm420, %v356, %v419
    %vm422 = vcmask 1045509
    %v423 = vsel %vm422, %v375, %v421
    %vm424 = vcmask 1046534
    %v425 = vsel %vm424, %v394, %v423
    %vm426 = vcmask 1047559
    %v427 = vsel %vm426, %v413, %v425
    %vm428 = vcmask 261120
    %v429 = vsel %vm428, %v427, 0
    %v432 = vsel %vm428, %v199, 0
    %v435 = vsel %vm428, %v200, 0
    %v438 = vsel %vm428, %v201, 0
    %v441 = vsel %vm428, %v202, 0
    %v444 = vsel %vm428, %v203, 0
    %v447 = vsel %vm428, %v204, 0
    %v450 = vsel %vm428, %v205, 0
    %v453 = vsel %vm428, %v206, 0
    %v456 = vsel %vm428, %v207, 0
    %v459 = vsel %vm428, %v208, 0
    %v462 = vsel %vm428, %v209, 0
    %v465 = vsel %vm428, %v210, 0
    %v468 = vsel %vm428, %v211, 0
    %v471 = vsel %vm428, %v212, 0
    %v474 = vsel %vm428, %v213, 0
    %v477 = vsel %vm428, %v214, 0
    %479 = vmatprep.subr.mxu0 0.0
    %480 = vmatpush1.xpose.msra.mxu0 %v432
    %481 = vmatprep.subr.mxu0 0.0
    %482 = vmatpush1.xpose.msra.mxu0 %v435
    %483 = vmatprep.subr.mxu0 0.0
    %484 = vmatpush1.xpose.msra.mxu0 %v438
    %485 = vmatprep.subr.mxu0 0.0
    %486 = vmatpush1.xpose.msra.mxu0 %v441
    %487 = vmatprep.subr.mxu0 0.0
    %488 = vmatpush1.xpose.msra.mxu0 %v444
    %489 = vmatprep.subr.mxu0 0.0
    %490 = vmatpush1.xpose.msra.mxu0 %v447
    %491 = vmatprep.subr.mxu0 0.0
    %492 = vmatpush1.xpose.msra.mxu0 %v450
    %493 = vmatprep.subr.mxu0 0.0
    %494 = vmatpush1.xpose.msra.mxu0 %v453
    %495 = vmatprep.subr.mxu0 0.0
    %496 = vmatpush1.xpose.msra.mxu0 %v456
    %497 = vmatprep.subr.mxu0 0.0
    %498 = vmatpush1.xpose.msra.mxu0 %v459
    %499 = vmatprep.subr.mxu0 0.0
    %500 = vmatpush1.xpose.msra.mxu0 %v462
    %501 = vmatprep.subr.mxu0 0.0
    %502 = vmatpush1.xpose.msra.mxu0 %v465
    %503 = vmatprep.subr.mxu0 0.0
    %504 = vmatpush1.xpose.msra.mxu0 %v468
    %505 = vmatprep.subr.mxu0 0.0
    %506 = vmatpush1.xpose.msra.mxu0 %v471
    %507 = vmatprep.subr.mxu0 0.0
    %508 = vmatpush1.xpose.msra.mxu0 %v474
    %509 = vmatprep.subr.mxu0 0.0
    %510 = vmatpush1.xpose.msra.mxu0 %v477
    %511 = vmatprep.subr.mxu0 0.0
    %512 = vmatpush1.xpose.msra.mxu0 0.0
    %513 = vmatprep.subr.mxu0 0.0
    %514 = vmatpush1.xpose.msra.mxu0 0.0
    %515 = vmatprep.subr.mxu0 0.0
    %516 = vmatpush1.xpose.msra.mxu0 0.0
    %517 = vmatprep.subr.mxu0 0.0
    %518 = vmatpush1.xpose.msra.mxu0 0.0
    %519 = vmatprep.subr.mxu0 0.0
    %520 = vmatpush1.xpose.msra.mxu0 0.0
    %521 = vmatprep.subr.mxu0 0.0
    %522 = vmatpush1.xpose.msra.mxu0 0.0
    %523 = vmatprep.subr.mxu0 0.0
    %524 = vmatpush1.xpose.msra.mxu0 0.0
    %525 = vmatprep.subr.mxu0 0.0
    %526 = vmatpush1.xpose.msra.mxu0 0.0
    %527 = vmatprep.subr.mxu0 0.0
    %528 = vmatpush1.xpose.msra.mxu0 0.0
    %529 = vmatprep.subr.mxu0 0.0
    %530 = vmatpush1.xpose.msra.mxu0 0.0
    %531 = vmatprep.subr.mxu0 0.0
    %532 = vmatpush1.xpose.msra.mxu0 0.0
    %533 = vmatprep.subr.mxu0 0.0
    %534 = vmatpush1.xpose.msra.mxu0 0.0
    %535 = vmatprep.subr.mxu0 0.0
    %536 = vmatpush1.xpose.msra.mxu0 0.0
    %537 = vmatprep.subr.mxu0 0.0
    %538 = vmatpush1.xpose.msra.mxu0 0.0
    %539 = vmatprep.subr.mxu0 0.0
    %540 = vmatpush1.xpose.msra.mxu0 0.0
    %541 = vmatprep.subr.mxu0 0.0
    %542 = vmatpush1.xpose.msra.mxu0 0.0
    %543 = vmatprep.mubr.f32.mxu0 0.0
    %544 = vmatmul.mubr.f32.gmra.mrb[0].mxu0 %v429
    %v545 = vpop.f32.mrb[0].mxu0
    %v546 = vadd.f32 %v220, %v545
    %v547 = vpop.f32.mrb[0].mxu0
    %548 = vdwg.mxu0
    %v549 = vrot.slane %v546, 4
    %v550 = vadd.f32 %v546, %v549
    %v551 = vrot.slane %v550, 2
    %v552 = vadd.f32 %v550, %v551
    %v553 = vrot.slane %v552, 1
    %v554 = vadd.f32 %v552, %v553
    %v555 = vrcp.pop 8.0
    %v556 = vmul.f32 %v554, %v555
    %v557 = vsub.f32 %v546, %v556
    %v558 = vmul.f32 %v557, %v557
    %v559 = vrot.slane %v558, 4
    %v560 = vadd.f32 %v558, %v559
    %v561 = vrot.slane %v560, 2
    %v562 = vadd.f32 %v560, %v561
    %v563 = vrot.slane %v562, 1
    %v564 = vadd.f32 %v562, %v563
    %v565 = vmul.f32 %v564, %v555
    %v566 = vadd.f32 %v565, 1e-05
    %v567 = vrsqrt.pop %v566
    %v568 = vmul.f32 %v557, %v567
    %v569 = vld [vmem:[%s3] sm:$0x1]
    %v571 = vlaneseq
    %v572 = vshrl.u32 %v571, 7
    %v573 = vsub.s32 0, %v572
    %v574 = vrot.slane %v569, %v573
    %v576 = vmul.f32 %v568, %v574
    %v577 = vld [vmem:[%s4] sm:$0x1]
    %v579 = vlaneseq
    %v580 = vshrl.u32 %v579, 7
    %v581 = vsub.s32 0, %v580
    %v582 = vrot.slane %v577, %v581
    %v584 = vadd.f32 %v576, %v582
    %585 = vst [vmem:[#allocation5] sm:$0xff] %v584
    %v586 = vmul.f32 %v584, %v584
    %587 = vadd.xlane.f32.xlu0 %v586
    %v588 = vpop.xlane.xlu0 %587
    %v589 = vmax.f32 %v588, 1e-24
    %v590 = vrsqrt.pop %v589
    %v591 = vmul.f32 %v584, %v590
    %592 = vst [vmem:[#allocation6] sm:$0xff] %v591
    // Predicated region
    $region26: #{tpu_custom_call.1} parent=1 // pred_check
      _
    $region27: #{tpu_custom_call.1} parent=1 // pred_check_branch
      %594 = sbr.rel (0) target = $region29
    $region28: #{tpu_custom_call.1} parent=1 // pred_region
      %s596 = ssub.s32 128, 128
      %597 = vsyncadd [#allocation4], %s596
      %s599 = sshll.u32 [#allocation5], 4
      %s600 = int_to_ptr.vmem [resolvable:$true] %s599
      %602 = dma.vmem_to_hbm [thread:$0]  %s600, 128, %s5, [#allocation4]
    $region29: #{tpu_custom_call.1} parent=1 // pred_fallthru
      _
    // Predicated region
    $region30: #{tpu_custom_call.1} parent=1 // pred_check
      _
    $region31: #{tpu_custom_call.1} parent=1 // pred_check_branch
      %604 = sbr.rel (0) target = $region33
    $region32: #{tpu_custom_call.1} parent=1 // pred_region
      %s606 = ssub.s32 128, 128
      %607 = vsyncadd [#allocation7], %s606
      %s609 = sshll.u32 [#allocation6], 4
      %s610 = int_to_ptr.vmem [resolvable:$true] %s609
      %612 = dma.vmem_to_hbm [thread:$0]  %s610, 128, %s6, [#allocation7]
    $region33: #{tpu_custom_call.1} parent=1 // pred_fallthru
      _
    // Predicated region
    $region34: #{tpu_custom_call.1} parent=1 // pred_check
      _
    $region35: #{tpu_custom_call.1} parent=1 // pred_check_branch
      %614 = sbr.rel (0) target = $region37
    $region36: #{tpu_custom_call.1} parent=1 // pred_region
      %615 = dma.done [#allocation4], 128
    $region37: #{tpu_custom_call.1} parent=1 // pred_fallthru
      _
    // Predicated region
    $region38: #{tpu_custom_call.1} parent=1 // pred_check
      _
    $region39: #{tpu_custom_call.1} parent=1 // pred_check_branch
      %617 = sbr.rel (0) target = $region41
    $region40: #{tpu_custom_call.1} parent=1 // pred_region
      %618 = dma.done [#allocation7], 128
    $region41: #{tpu_custom_call.1} parent=1 // pred_fallthru
      _
    %619 = vsyncpa [#allocation3], 1
    %620 = vsyncpa [#allocation4], 1
    %621 = vsyncpa [#allocation7], 1

</llo_original>
